<compile_context>
chip_gen: v6e
topology: v6e:2x2x1
jax: 0.10.0
libtpu: 0.0.40
codegen_flags: <defaults>
</compile_context>

<pallas_src>
import functools

import jax
import jax.numpy as jnp
import numpy as np
from jax.experimental import pallas as pl
from jax.experimental.pallas import tpu as pltpu


# ---------------------------------------------------------------------------
# Fused Pallas kernel: NB batch samples per grid step.
# ---------------------------------------------------------------------------
def _double_conv_kernel(x_ref, w1_ref, g1_ref, b1_ref, w2_ref, g2_ref, b2_ref,
                        o_ref, slab1_ref, slab2_ref, *,
                        h_img, w_img, residual, eps):
    nb = x_ref.shape[0]
    L = h_img * w_img
    cmid = w1_ref.shape[0]
    cout = w2_ref.shape[0]

    # Zero the stacked-tap slabs.  Only the small per-tap margins (row under/overflow
    # positions, never written below) rely on staying zero; unconditional zeroing keeps
    # every TensorCore's scratch valid regardless of how grid steps are scheduled.
    slab1_ref[...] = jnp.zeros_like(slab1_ref)
    slab2_ref[...] = jnp.zeros_like(slab2_ref)

    # Column-validity masks (dx = -1 / +1) from an in-kernel iota; shared by both convs
    # and all samples of the block.  Row under/overflow needs no mask: those slab
    # positions are simply never written and keep their zero init.
    col = jax.lax.broadcasted_iota(jnp.int32, (1, L), 1) % w_img
    col_mask = {-1: col >= 1, 0: None, 1: col < (w_img - 1)}
    # Tap order t = ky*3 + kx matches the (Cout, 9*Cin) weight folding in the wrapper.
    taps = [(dy * w_img + dx, col_mask[dx])
            for dy in (-1, 0, 1) for dx in (-1, 0, 1)]

    def conv3x3(src, w_ref, slab_ref):
        # src: (C, L) f32.  Stack the 9 shifted/masked taps along the contraction
        # (sublane) axis of the VMEM slab, then run ONE MXU matmul per conv & sample:
        # (Cout, 9*C) @ (9*C, L) with f32 accumulation.
        c = src.shape[0]
        for t, (off, mask) in enumerate(taps):
            lo = max(0, -off)          # first output column whose shifted source is valid
            hi = L - max(0, off)       # one past the last valid output column
            val = src[:, lo + off:hi + off]
            if mask is not None:
                val = jnp.where(mask[:, lo:hi], val, 0.0)
            slab_ref[t * c:(t + 1) * c, lo:hi] = val.astype(jnp.bfloat16)
        return jnp.dot(w_ref[...], slab_ref[...],
                       preferred_element_type=jnp.float32)

    def group_norm(y, g, b, nchan):
        # GroupNorm(num_groups=1): per-sample stats over channels x all pixels (no
        # padding slack -> no masking).  Stable two-pass form, biased var like PyTorch.
        cnt = float(nchan * L)
        mean = jnp.sum(y, keepdims=True) / cnt
        cen = y - mean
        var = jnp.sum(cen * cen, keepdims=True) / cnt
        return cen * jax.lax.rsqrt(var + eps) * g + b

    for s in range(nb):                                    # static unroll over samples
        xv = x_ref[s].astype(jnp.float32)                  # (Cin, L)
        a1 = conv3x3(xv, w1_ref, slab1_ref)                # (Cmid, L) f32
        hid = jnp.maximum(group_norm(a1, g1_ref[...], b1_ref[...], cmid), 0.0)
        a2 = conv3x3(hid, w2_ref, slab2_ref)               # (Cout, L) f32
        y = group_norm(a2, g2_ref[...], b2_ref[...], cout)
        if residual:
            y = jnp.maximum(xv + y, 0.0)                   # Cin == Cout when residual
        o_ref[s] = y.astype(o_ref.dtype)


# ---------------------------------------------------------------------------
# Wrapper: layout plumbing + pallas_call.
# ---------------------------------------------------------------------------
def _pick_batch_block(n, max_nb=8):
    """Largest divisor of n that is <= max_nb while keeping >= 2 grid steps when
    n >= 2 (so both v7x TensorCores get work on the 'parallel' batch axis)."""
    best = 1
    for d in range(1, n + 1):
        if n % d == 0 and d <= max_nb and (n < 2 or n // d >= 2):
            best = d
    return best


def double_conv(x_nchw, w1, g1, b1, w2, g2, b2, *, residual=False, max_batch_block=8):
    """Pallas implementation of DoubleConv.forward.  Input/output are NCHW."""
    n, cin, h, w = x_nchw.shape
    cmid = w1.shape[0]
    cout = w2.shape[0]
    L = h * w

    # Free layout plumbing only: NCHW -> (N, C, H*W).  No HBM pads / transposes / masks.
    x_flat = x_nchw.reshape(n, cin, L)

    # Fold the 9 taps into the MXU contraction dim: (Cout, 9*Cin), k = (ky*3+kx)*Cin + cin.
    w1_t = jnp.transpose(w1, (0, 2, 3, 1)).reshape(cmid, 9 * cin).astype(jnp.bfloat16)
    w2_t = jnp.transpose(w2, (0, 2, 3, 1)).reshape(cout, 9 * cmid).astype(jnp.bfloat16)
    g1c = g1.reshape(cmid, 1).astype(jnp.float32)
    b1c = b1.reshape(cmid, 1).astype(jnp.float32)
    g2c = g2.reshape(cout, 1).astype(jnp.float32)
    b2c = b2.reshape(cout, 1).astype(jnp.float32)

    nb = _pick_batch_block(n, max_batch_block)

    kernel = functools.partial(_double_conv_kernel, h_img=h, w_img=w,
                               residual=residual, eps=1e-5)

    out = pl.pallas_call(
        kernel,
        out_shape=jax.ShapeDtypeStruct((n, cout, L), x_nchw.dtype),
        grid=(n // nb,),
        in_specs=[
            pl.BlockSpec((nb, cin, L), lambda i: (i, 0, 0)),
            pl.BlockSpec((cmid, 9 * cin), lambda i: (0, 0)),
            pl.BlockSpec((cmid, 1), lambda i: (0, 0)),
            pl.BlockSpec((cmid, 1), lambda i: (0, 0)),
            pl.BlockSpec((cout, 9 * cmid), lambda i: (0, 0)),
            pl.BlockSpec((cout, 1), lambda i: (0, 0)),
            pl.BlockSpec((cout, 1), lambda i: (0, 0)),
        ],
        out_specs=pl.BlockSpec((nb, cout, L), lambda i: (i, 0, 0)),
        scratch_shapes=[
            pltpu.VMEM((9 * cin, L), jnp.bfloat16),    # stage-1 stacked-tap slab
            pltpu.VMEM((9 * cmid, L), jnp.bfloat16),   # stage-2 stacked-tap slab
        ],
        compiler_params=pltpu.CompilerParams(
            dimension_semantics=("parallel",)),
    )(x_flat, w1_t, g1c, b1c, w2_t, g2c, b2c)

    return out.reshape(n, cout, h, w)


# ---------------------------------------------------------------------------
# Pure-JAX reference (mirrors the PyTorch module semantics).
# ---------------------------------------------------------------------------
def double_conv_ref(x_nchw, w1, g1, b1, w2, g2, b2, *, residual=False, eps=1e-5):
    def conv(x, w):
        return jax.lax.conv_general_dilated(
            x, w, window_strides=(1, 1), padding=((1, 1), (1, 1)),
            dimension_numbers=("NCHW", "OIHW", "NCHW"))

    def gn(x, g, b):
        mean = x.mean(axis=(1, 2, 3), keepdims=True)
        var = jnp.square(x - mean).mean(axis=(1, 2, 3), keepdims=True)
        xn = (x - mean) * jax.lax.rsqrt(var + eps)
        return xn * g[None, :, None, None] + b[None, :, None, None]

    h = jax.nn.relu(gn(conv(x_nchw, w1), g1, b1))
    y = gn(conv(h, w2), g2, b2)
    if residual:
        y = jax.nn.relu(x_nchw + y)
    return y


def _make_params(key, cin, cmid, cout):
    ks = jax.random.split(key, 6)
    w1 = 0.2 * jax.random.normal(ks[0], (cmid, cin, 3, 3), jnp.float32)
    g1 = 1.0 + 0.1 * jax.random.normal(ks[1], (cmid,), jnp.float32)
    b1 = 0.1 * jax.random.normal(ks[2], (cmid,), jnp.float32)
    w2 = 0.2 * jax.random.normal(ks[3], (cout, cmid, 3, 3), jnp.float32)
    g2 = 1.0 + 0.1 * jax.random.normal(ks[4], (cout,), jnp.float32)
    b2 = 0.1 * jax.random.normal(ks[5], (cout,), jnp.float32)
    return w1, g1, b1, w2, g2, b2


if __name__ == "__main__":
    key = jax.random.PRNGKey(0)
    k_x, k_p1, k_p2 = jax.random.split(key, 3)

    N, Cin, H, W = 2, 4, 16, 16
    x = jax.random.normal(k_x, (N, Cin, H, W), jnp.float32)

    # Case 1: DoubleConv(in=4, out=8), residual=False (mid defaults to out).
    Cout = 8
    params = _make_params(k_p1, Cin, Cout, Cout)
    out = double_conv(x, *params, residual=False)
    jax.block_until_ready(out)
    ref = double_conv_ref(x, *params, residual=False)
    np.testing.assert_allclose(np.asarray(out), np.asarray(ref), atol=5e-2, rtol=5e-2)

    # Case 2: DoubleConv(in=4, out=4, residual=True).
    params_res = _make_params(k_p2, Cin, Cin, Cin)
    out_res = double_conv(x, *params_res, residual=True)
    jax.block_until_ready(out_res)
    ref_res = double_conv_ref(x, *params_res, residual=True)
    np.testing.assert_allclose(np.asarray(out_res), np.asarray(ref_res), atol=5e-2, rtol=5e-2)

    print("KERNEL_OK")
</pallas_src>

<mosaic_0001>
module attributes {stable_mosaic.version = 11 : i64} {
  func.func @_double_conv_kernel(%arg0: i32, %arg1: memref<1x4x256xf32, #tpu.memory_space<vmem>>, %arg2: memref<8x36xbf16, #tpu.memory_space<vmem>>, %arg3: memref<8x1xf32, #tpu.memory_space<vmem>>, %arg4: memref<8x1xf32, #tpu.memory_space<vmem>>, %arg5: memref<8x72xbf16, #tpu.memory_space<vmem>>, %arg6: memref<8x1xf32, #tpu.memory_space<vmem>>, %arg7: memref<8x1xf32, #tpu.memory_space<vmem>>, %arg8: memref<1x8x256xf32, #tpu.memory_space<vmem>>, %arg9: memref<36x256xbf16, #tpu.memory_space<vmem>>, %arg10: memref<72x256xbf16, #tpu.memory_space<vmem>>) attributes {dimension_semantics = [#tpu.dimension_semantics<parallel>], iteration_bounds = array<i64: 2>, scalar_prefetch = 0 : i64, scratch_operands = 2 : i64, tpu.core_type = #tpu.core_type<tc>, window_params = [{transform_indices = @transform_0, window_bounds = array<i64: 1, 4, 256>}, {pipeline_mode = #tpu.pipeline_mode<synchronous>, transform_indices = @transform_1, window_bounds = array<i64: 8, 36>}, {pipeline_mode = #tpu.pipeline_mode<synchronous>, transform_indices = @transform_2, window_bounds = array<i64: 8, 1>}, {pipeline_mode = #tpu.pipeline_mode<synchronous>, transform_indices = @transform_3, window_bounds = array<i64: 8, 1>}, {pipeline_mode = #tpu.pipeline_mode<synchronous>, transform_indices = @transform_4, window_bounds = array<i64: 8, 72>}, {pipeline_mode = #tpu.pipeline_mode<synchronous>, transform_indices = @transform_5, window_bounds = array<i64: 8, 1>}, {pipeline_mode = #tpu.pipeline_mode<synchronous>, transform_indices = @transform_6, window_bounds = array<i64: 8, 1>}, {transform_indices = @transform_7, window_bounds = array<i64: 1, 8, 256>}]} {
    %cst = arith.constant 0.000000e+00 : bf16
    %0 = vector.broadcast %cst : bf16 to vector<36x256xbf16>
    %c0 = arith.constant 0 : index
    %c0_0 = arith.constant 0 : index
    %1 = vector.load %arg9[%c0, %c0_0] : memref<36x256xbf16, #tpu.memory_space<vmem>>, vector<36x256xbf16>
    tpu.vector_store %arg9[%c0, %c0_0], %0 {strides = array<i32>} : memref<36x256xbf16, #tpu.memory_space<vmem>>, vector<36x256xbf16>,
    %cst_1 = arith.constant 0.000000e+00 : bf16
    %2 = vector.broadcast %cst_1 : bf16 to vector<72x256xbf16>
    %c0_2 = arith.constant 0 : index
    %c0_3 = arith.constant 0 : index
    %3 = vector.load %arg10[%c0_2, %c0_3] : memref<72x256xbf16, #tpu.memory_space<vmem>>, vector<72x256xbf16>
    tpu.vector_store %arg10[%c0_2, %c0_3], %2 {strides = array<i32>} : memref<72x256xbf16, #tpu.memory_space<vmem>>, vector<72x256xbf16>,
    %4 = tpu.iota {dimensions = array<i32: 1>} : vector<1x256xi32>
    %c16_i32 = arith.constant 16 : i32
    %c0_i32 = arith.constant 0 : i32
    %5 = arith.cmpi eq, %c16_i32, %c0_i32 : i32
    %c1_i32 = arith.constant 1 : i32
    %6 = arith.select %5, %c1_i32, %c16_i32 : i32
    %7 = vector.broadcast %6 : i32 to vector<1x256xi32>
    %8 = arith.remsi %4, %7 : vector<1x256xi32>
    %c0_i32_4 = arith.constant 0 : i32
    %9 = vector.broadcast %c0_i32_4 : i32 to vector<1x256xi32>
    %10 = arith.cmpi ne, %8, %9 : vector<1x256xi32>
    %c0_i32_5 = arith.constant 0 : i32
    %11 = vector.broadcast %c0_i32_5 : i32 to vector<1x256xi32>
    %12 = arith.cmpi slt, %8, %11 : vector<1x256xi32>
    %c0_i32_6 = arith.constant 0 : i32
    %13 = arith.cmpi slt, %6, %c0_i32_6 : i32
    %14 = vector.broadcast %13 : i1 to vector<1x256xi1>
    %15 = vector.broadcast %14 : vector<1x256xi1> to vector<1x256xi1>
    %16 = arith.xori %12, %15 : vector<1x256xi1>
    %17 = arith.andi %16, %10 : vector<1x256xi1>
    %18 = vector.broadcast %6 : i32 to vector<1x256xi32>
    %19 = arith.addi %8, %18 : vector<1x256xi32>
    %20 = arith.select %17, %19, %8 : vector<1x256xi1>, vector<1x256xi32>
    %c1_i32_7 = arith.constant 1 : i32
    %21 = vector.broadcast %c1_i32_7 : i32 to vector<1x256xi32>
    %22 = arith.cmpi sge, %20, %21 : vector<1x256xi32>
    %c15_i32 = arith.constant 15 : i32
    %23 = vector.broadcast %c15_i32 : i32 to vector<1x256xi32>
    %24 = arith.cmpi slt, %20, %23 : vector<1x256xi32>
    %c0_8 = arith.constant 0 : index
    %c0_9 = arith.constant 0 : index
    %c0_10 = arith.constant 0 : index
    %25 = vector.load %arg1[%c0_8, %c0_9, %c0_10] : memref<1x4x256xf32, #tpu.memory_space<vmem>>, vector<1x4x256xf32>
    %26 = vector.shape_cast %25 : vector<1x4x256xf32> to vector<4x256xf32>
    %27 = vector.extract_strided_slice %26 {offsets = [0, 0], sizes = [4, 239], strides = [1, 1]} : vector<4x256xf32> to vector<4x239xf32>
    %28 = vector.extract_strided_slice %22 {offsets = [0, 17], sizes = [1, 239], strides = [1, 1]} : vector<1x256xi1> to vector<1x239xi1>
    %cst_11 = arith.constant 0.000000e+00 : f32
    %29 = vector.shape_cast %28 : vector<1x239xi1> to vector<1x239xi1>
    %30 = vector.broadcast %29 : vector<1x239xi1> to vector<4x239xi1>
    %31 = vector.broadcast %cst_11 : f32 to vector<4x239xf32>
    %32 = arith.select %30, %27, %31 : vector<4x239xi1>, vector<4x239xf32>
    %33 = arith.truncf %32 : vector<4x239xf32> to vector<4x239xbf16>
    %c0_12 = arith.constant 0 : index
    %c17 = arith.constant 17 : index
    %34 = vector.load %arg9[%c0_12, %c17] : memref<36x256xbf16, #tpu.memory_space<vmem>>, vector<4x239xbf16>
    tpu.vector_store %arg9[%c0_12, %c17], %33 {strides = array<i32>} : memref<36x256xbf16, #tpu.memory_space<vmem>>, vector<4x239xbf16>,
    %35 = vector.extract_strided_slice %26 {offsets = [0, 0], sizes = [4, 240], strides = [1, 1]} : vector<4x256xf32> to vector<4x240xf32>
    %36 = arith.truncf %35 : vector<4x240xf32> to vector<4x240xbf16>
    %c4 = arith.constant 4 : index
    %c16 = arith.constant 16 : index
    %37 = vector.load %arg9[%c4, %c16] : memref<36x256xbf16, #tpu.memory_space<vmem>>, vector<4x240xbf16>
    tpu.vector_store %arg9[%c4, %c16], %36 {strides = array<i32>} : memref<36x256xbf16, #tpu.memory_space<vmem>>, vector<4x240xbf16>,
    %38 = vector.extract_strided_slice %26 {offsets = [0, 0], sizes = [4, 241], strides = [1, 1]} : vector<4x256xf32> to vector<4x241xf32>
    %39 = vector.extract_strided_slice %24 {offsets = [0, 15], sizes = [1, 241], strides = [1, 1]} : vector<1x256xi1> to vector<1x241xi1>
    %cst_13 = arith.constant 0.000000e+00 : f32
    %40 = vector.shape_cast %39 : vector<1x241xi1> to vector<1x241xi1>
    %41 = vector.broadcast %40 : vector<1x241xi1> to vector<4x241xi1>
    %42 = vector.broadcast %cst_13 : f32 to vector<4x241xf32>
    %43 = arith.select %41, %38, %42 : vector<4x241xi1>, vector<4x241xf32>
    %44 = arith.truncf %43 : vector<4x241xf32> to vector<4x241xbf16>
    %c8 = arith.constant 8 : index
    %c15 = arith.constant 15 : index
    %45 = vector.load %arg9[%c8, %c15] : memref<36x256xbf16, #tpu.memory_space<vmem>>, vector<4x241xbf16>
    tpu.vector_store %arg9[%c8, %c15], %44 {strides = array<i32>} : memref<36x256xbf16, #tpu.memory_space<vmem>>, vector<4x241xbf16>,
    %46 = vector.extract_strided_slice %26 {offsets = [0, 0], sizes = [4, 255], strides = [1, 1]} : vector<4x256xf32> to vector<4x255xf32>
    %47 = vector.extract_strided_slice %22 {offsets = [0, 1], sizes = [1, 255], strides = [1, 1]} : vector<1x256xi1> to vector<1x255xi1>
    %cst_14 = arith.constant 0.000000e+00 : f32
    %48 = vector.shape_cast %47 : vector<1x255xi1> to vector<1x255xi1>
    %49 = vector.broadcast %48 : vector<1x255xi1> to vector<4x255xi1>
    %50 = vector.broadcast %cst_14 : f32 to vector<4x255xf32>
    %51 = arith.select %49, %46, %50 : vector<4x255xi1>, vector<4x255xf32>
    %52 = arith.truncf %51 : vector<4x255xf32> to vector<4x255xbf16>
    %c12 = arith.constant 12 : index
    %c1 = arith.constant 1 : index
    %53 = vector.load %arg9[%c12, %c1] : memref<36x256xbf16, #tpu.memory_space<vmem>>, vector<4x255xbf16>
    tpu.vector_store %arg9[%c12, %c1], %52 {strides = array<i32>} : memref<36x256xbf16, #tpu.memory_space<vmem>>, vector<4x255xbf16>,
    %54 = arith.truncf %26 : vector<4x256xf32> to vector<4x256xbf16>
    %c16_15 = arith.constant 16 : index
    %c0_16 = arith.constant 0 : index
    %55 = vector.load %arg9[%c16_15, %c0_16] : memref<36x256xbf16, #tpu.memory_space<vmem>>, vector<4x256xbf16>
    tpu.vector_store %arg9[%c16_15, %c0_16], %54 {strides = array<i32>} : memref<36x256xbf16, #tpu.memory_space<vmem>>, vector<4x256xbf16>,
    %56 = vector.extract_strided_slice %26 {offsets = [0, 1], sizes = [4, 255], strides = [1, 1]} : vector<4x256xf32> to vector<4x255xf32>
    %57 = vector.extract_strided_slice %24 {offsets = [0, 0], sizes = [1, 255], strides = [1, 1]} : vector<1x256xi1> to vector<1x255xi1>
    %cst_17 = arith.constant 0.000000e+00 : f32
    %58 = vector.shape_cast %57 : vector<1x255xi1> to vector<1x255xi1>
    %59 = vector.broadcast %58 : vector<1x255xi1> to vector<4x255xi1>
    %60 = vector.broadcast %cst_17 : f32 to vector<4x255xf32>
    %61 = arith.select %59, %56, %60 : vector<4x255xi1>, vector<4x255xf32>
    %62 = arith.truncf %61 : vector<4x255xf32> to vector<4x255xbf16>
    %c20 = arith.constant 20 : index
    %c0_18 = arith.constant 0 : index
    %63 = vector.load %arg9[%c20, %c0_18] : memref<36x256xbf16, #tpu.memory_space<vmem>>, vector<4x255xbf16>
    tpu.vector_store %arg9[%c20, %c0_18], %62 {strides = array<i32>} : memref<36x256xbf16, #tpu.memory_space<vmem>>, vector<4x255xbf16>,
    %64 = vector.extract_strided_slice %26 {offsets = [0, 15], sizes = [4, 241], strides = [1, 1]} : vector<4x256xf32> to vector<4x241xf32>
    %65 = vector.extract_strided_slice %22 {offsets = [0, 0], sizes = [1, 241], strides = [1, 1]} : vector<1x256xi1> to vector<1x241xi1>
    %cst_19 = arith.constant 0.000000e+00 : f32
    %66 = vector.shape_cast %65 : vector<1x241xi1> to vector<1x241xi1>
    %67 = vector.broadcast %66 : vector<1x241xi1> to vector<4x241xi1>
    %68 = vector.broadcast %cst_19 : f32 to vector<4x241xf32>
    %69 = arith.select %67, %64, %68 : vector<4x241xi1>, vector<4x241xf32>
    %70 = arith.truncf %69 : vector<4x241xf32> to vector<4x241xbf16>
    %c24 = arith.constant 24 : index
    %c0_20 = arith.constant 0 : index
    %71 = vector.load %arg9[%c24, %c0_20] : memref<36x256xbf16, #tpu.memory_space<vmem>>, vector<4x241xbf16>
    tpu.vector_store %arg9[%c24, %c0_20], %70 {strides = array<i32>} : memref<36x256xbf16, #tpu.memory_space<vmem>>, vector<4x241xbf16>,
    %72 = vector.extract_strided_slice %26 {offsets = [0, 16], sizes = [4, 240], strides = [1, 1]} : vector<4x256xf32> to vector<4x240xf32>
    %73 = arith.truncf %72 : vector<4x240xf32> to vector<4x240xbf16>
    %c28 = arith.constant 28 : index
    %c0_21 = arith.constant 0 : index
    %74 = vector.load %arg9[%c28, %c0_21] : memref<36x256xbf16, #tpu.memory_space<vmem>>, vector<4x240xbf16>
    tpu.vector_store %arg9[%c28, %c0_21], %73 {strides = array<i32>} : memref<36x256xbf16, #tpu.memory_space<vmem>>, vector<4x240xbf16>,
    %75 = vector.extract_strided_slice %26 {offsets = [0, 17], sizes = [4, 239], strides = [1, 1]} : vector<4x256xf32> to vector<4x239xf32>
    %76 = vector.extract_strided_slice %24 {offsets = [0, 0], sizes = [1, 239], strides = [1, 1]} : vector<1x256xi1> to vector<1x239xi1>
    %cst_22 = arith.constant 0.000000e+00 : f32
    %77 = vector.shape_cast %76 : vector<1x239xi1> to vector<1x239xi1>
    %78 = vector.broadcast %77 : vector<1x239xi1> to vector<4x239xi1>
    %79 = vector.broadcast %cst_22 : f32 to vector<4x239xf32>
    %80 = arith.select %78, %75, %79 : vector<4x239xi1>, vector<4x239xf32>
    %81 = arith.truncf %80 : vector<4x239xf32> to vector<4x239xbf16>
    %c32 = arith.constant 32 : index
    %c0_23 = arith.constant 0 : index
    %82 = vector.load %arg9[%c32, %c0_23] : memref<36x256xbf16, #tpu.memory_space<vmem>>, vector<4x239xbf16>
    tpu.vector_store %arg9[%c32, %c0_23], %81 {strides = array<i32>} : memref<36x256xbf16, #tpu.memory_space<vmem>>, vector<4x239xbf16>,
    %c0_24 = arith.constant 0 : index
    %c0_25 = arith.constant 0 : index
    %83 = vector.load %arg2[%c0_24, %c0_25] : memref<8x36xbf16, #tpu.memory_space<vmem>>, vector<8x36xbf16>
    %c0_26 = arith.constant 0 : index
    %c0_27 = arith.constant 0 : index
    %84 = vector.load %arg9[%c0_26, %c0_27] : memref<36x256xbf16, #tpu.memory_space<vmem>>, vector<36x256xbf16>
    %cst_28 = arith.constant dense<0.000000e+00> : vector<8x256xf32>
    %85 = tpu.matmul %83, %84, %cst_28 {dimension_numbers = #tpu.dot_dimension_numbers<[1], [0], [0], [1], [0, 0, 1, 1], [], []>} : vector<8x36xbf16>, vector<36x256xbf16>, vector<8x256xf32> -> vector<8x256xf32>
    %c0_29 = arith.constant 0 : index
    %c0_30 = arith.constant 0 : index
    %86 = vector.load %arg3[%c0_29, %c0_30] : memref<8x1xf32, #tpu.memory_space<vmem>>, vector<8x1xf32>
    %c0_31 = arith.constant 0 : index
    %c0_32 = arith.constant 0 : index
    %87 = vector.load %arg4[%c0_31, %c0_32] : memref<8x1xf32, #tpu.memory_space<vmem>>, vector<8x1xf32>
    %88 = vector.shape_cast %85 : vector<8x256xf32> to vector<1x8x256xf32>
    %cst_33 = arith.constant dense<0.000000e+00> : vector<1xf32>
    %89 = vector.multi_reduction <add>, %88, %cst_33 [1, 2] : vector<1x8x256xf32> to vector<1xf32>
    %90 = vector.shape_cast %89 : vector<1xf32> to vector<1x1x1xf32>
    %91 = vector.extract %90[0, 0, 0] : f32 from vector<1x1x1xf32>
    %92 = vector.broadcast %91 : f32 to vector<1x1xf32>
    %cst_34 = arith.constant 2.048000e+03 : f32
    %93 = vector.broadcast %cst_34 : f32 to vector<1x1xf32>
    %94 = arith.divf %92, %93 : vector<1x1xf32>
    %95 = vector.broadcast %94 : vector<1x1xf32> to vector<8x256xf32>
    %96 = arith.subf %85, %95 : vector<8x256xf32>
    %97 = arith.mulf %96, %96 : vector<8x256xf32>
    %98 = vector.shape_cast %97 : vector<8x256xf32> to vector<1x8x256xf32>
    %cst_35 = arith.constant dense<0.000000e+00> : vector<1xf32>
    %99 = vector.multi_reduction <add>, %98, %cst_35 [1, 2] : vector<1x8x256xf32> to vector<1xf32>
    %100 = vector.shape_cast %99 : vector<1xf32> to vector<1x1x1xf32>
    %101 = vector.extract %100[0, 0, 0] : f32 from vector<1x1x1xf32>
    %102 = vector.broadcast %101 : f32 to vector<1x1xf32>
    %cst_36 = arith.constant 2.048000e+03 : f32
    %103 = vector.broadcast %cst_36 : f32 to vector<1x1xf32>
    %104 = arith.divf %102, %103 : vector<1x1xf32>
    %cst_37 = arith.constant 9.99999974E-6 : f32
    %105 = vector.broadcast %cst_37 : f32 to vector<1x1xf32>
    %106 = arith.addf %104, %105 : vector<1x1xf32>
    %107 = math.rsqrt %106 : vector<1x1xf32>
    %108 = vector.broadcast %107 : vector<1x1xf32> to vector<8x256xf32>
    %109 = arith.mulf %96, %108 : vector<8x256xf32>
    %110 = vector.broadcast %86 : vector<8x1xf32> to vector<8x256xf32>
    %111 = arith.mulf %109, %110 : vector<8x256xf32>
    %112 = vector.broadcast %87 : vector<8x1xf32> to vector<8x256xf32>
    %113 = arith.addf %111, %112 : vector<8x256xf32>
    %cst_38 = arith.constant 0.000000e+00 : f32
    %114 = vector.broadcast %cst_38 : f32 to vector<8x256xf32>
    %115 = arith.maximumf %113, %114 : vector<8x256xf32>
    %116 = vector.extract_strided_slice %115 {offsets = [0, 0], sizes = [8, 239], strides = [1, 1]} : vector<8x256xf32> to vector<8x239xf32>
    %117 = vector.extract_strided_slice %22 {offsets = [0, 17], sizes = [1, 239], strides = [1, 1]} : vector<1x256xi1> to vector<1x239xi1>
    %cst_39 = arith.constant 0.000000e+00 : f32
    %118 = vector.shape_cast %117 : vector<1x239xi1> to vector<1x239xi1>
    %119 = vector.broadcast %118 : vector<1x239xi1> to vector<8x239xi1>
    %120 = vector.broadcast %cst_39 : f32 to vector<8x239xf32>
    %121 = arith.select %119, %116, %120 : vector<8x239xi1>, vector<8x239xf32>
    %122 = arith.truncf %121 : vector<8x239xf32> to vector<8x239xbf16>
    %c0_40 = arith.constant 0 : index
    %c17_41 = arith.constant 17 : index
    %123 = vector.load %arg10[%c0_40, %c17_41] : memref<72x256xbf16, #tpu.memory_space<vmem>>, vector<8x239xbf16>
    tpu.vector_store %arg10[%c0_40, %c17_41], %122 {strides = array<i32>} : memref<72x256xbf16, #tpu.memory_space<vmem>>, vector<8x239xbf16>,
    %124 = vector.extract_strided_slice %115 {offsets = [0, 0], sizes = [8, 240], strides = [1, 1]} : vector<8x256xf32> to vector<8x240xf32>
    %125 = arith.truncf %124 : vector<8x240xf32> to vector<8x240xbf16>
    %c8_42 = arith.constant 8 : index
    %c16_43 = arith.constant 16 : index
    %126 = vector.load %arg10[%c8_42, %c16_43] : memref<72x256xbf16, #tpu.memory_space<vmem>>, vector<8x240xbf16>
    tpu.vector_store %arg10[%c8_42, %c16_43], %125 {strides = array<i32>} : memref<72x256xbf16, #tpu.memory_space<vmem>>, vector<8x240xbf16>,
    %127 = vector.extract_strided_slice %115 {offsets = [0, 0], sizes = [8, 241], strides = [1, 1]} : vector<8x256xf32> to vector<8x241xf32>
    %128 = vector.extract_strided_slice %24 {offsets = [0, 15], sizes = [1, 241], strides = [1, 1]} : vector<1x256xi1> to vector<1x241xi1>
    %cst_44 = arith.constant 0.000000e+00 : f32
    %129 = vector.shape_cast %128 : vector<1x241xi1> to vector<1x241xi1>
    %130 = vector.broadcast %129 : vector<1x241xi1> to vector<8x241xi1>
    %131 = vector.broadcast %cst_44 : f32 to vector<8x241xf32>
    %132 = arith.select %130, %127, %131 : vector<8x241xi1>, vector<8x241xf32>
    %133 = arith.truncf %132 : vector<8x241xf32> to vector<8x241xbf16>
    %c16_45 = arith.constant 16 : index
    %c15_46 = arith.constant 15 : index
    %134 = vector.load %arg10[%c16_45, %c15_46] : memref<72x256xbf16, #tpu.memory_space<vmem>>, vector<8x241xbf16>
    tpu.vector_store %arg10[%c16_45, %c15_46], %133 {strides = array<i32>} : memref<72x256xbf16, #tpu.memory_space<vmem>>, vector<8x241xbf16>,
    %135 = vector.extract_strided_slice %115 {offsets = [0, 0], sizes = [8, 255], strides = [1, 1]} : vector<8x256xf32> to vector<8x255xf32>
    %136 = vector.extract_strided_slice %22 {offsets = [0, 1], sizes = [1, 255], strides = [1, 1]} : vector<1x256xi1> to vector<1x255xi1>
    %cst_47 = arith.constant 0.000000e+00 : f32
    %137 = vector.shape_cast %136 : vector<1x255xi1> to vector<1x255xi1>
    %138 = vector.broadcast %137 : vector<1x255xi1> to vector<8x255xi1>
    %139 = vector.broadcast %cst_47 : f32 to vector<8x255xf32>
    %140 = arith.select %138, %135, %139 : vector<8x255xi1>, vector<8x255xf32>
    %141 = arith.truncf %140 : vector<8x255xf32> to vector<8x255xbf16>
    %c24_48 = arith.constant 24 : index
    %c1_49 = arith.constant 1 : index
    %142 = vector.load %arg10[%c24_48, %c1_49] : memref<72x256xbf16, #tpu.memory_space<vmem>>, vector<8x255xbf16>
    tpu.vector_store %arg10[%c24_48, %c1_49], %141 {strides = array<i32>} : memref<72x256xbf16, #tpu.memory_space<vmem>>, vector<8x255xbf16>,
    %143 = arith.truncf %115 : vector<8x256xf32> to vector<8x256xbf16>
    %c32_50 = arith.constant 32 : index
    %c0_51 = arith.constant 0 : index
    %144 = vector.load %arg10[%c32_50, %c0_51] : memref<72x256xbf16, #tpu.memory_space<vmem>>, vector<8x256xbf16>
    tpu.vector_store %arg10[%c32_50, %c0_51], %143 {strides = array<i32>} : memref<72x256xbf16, #tpu.memory_space<vmem>>, vector<8x256xbf16>,
    %145 = vector.extract_strided_slice %115 {offsets = [0, 1], sizes = [8, 255], strides = [1, 1]} : vector<8x256xf32> to vector<8x255xf32>
    %146 = vector.extract_strided_slice %24 {offsets = [0, 0], sizes = [1, 255], strides = [1, 1]} : vector<1x256xi1> to vector<1x255xi1>
    %cst_52 = arith.constant 0.000000e+00 : f32
    %147 = vector.shape_cast %146 : vector<1x255xi1> to vector<1x255xi1>
    %148 = vector.broadcast %147 : vector<1x255xi1> to vector<8x255xi1>
    %149 = vector.broadcast %cst_52 : f32 to vector<8x255xf32>
    %150 = arith.select %148, %145, %149 : vector<8x255xi1>, vector<8x255xf32>
    %151 = arith.truncf %150 : vector<8x255xf32> to vector<8x255xbf16>
    %c40 = arith.constant 40 : index
    %c0_53 = arith.constant 0 : index
    %152 = vector.load %arg10[%c40, %c0_53] : memref<72x256xbf16, #tpu.memory_space<vmem>>, vector<8x255xbf16>
    tpu.vector_store %arg10[%c40, %c0_53], %151 {strides = array<i32>} : memref<72x256xbf16, #tpu.memory_space<vmem>>, vector<8x255xbf16>,
    %153 = vector.extract_strided_slice %115 {offsets = [0, 15], sizes = [8, 241], strides = [1, 1]} : vector<8x256xf32> to vector<8x241xf32>
    %154 = vector.extract_strided_slice %22 {offsets = [0, 0], sizes = [1, 241], strides = [1, 1]} : vector<1x256xi1> to vector<1x241xi1>
    %cst_54 = arith.constant 0.000000e+00 : f32
    %155 = vector.shape_cast %154 : vector<1x241xi1> to vector<1x241xi1>
    %156 = vector.broadcast %155 : vector<1x241xi1> to vector<8x241xi1>
    %157 = vector.broadcast %cst_54 : f32 to vector<8x241xf32>
    %158 = arith.select %156, %153, %157 : vector<8x241xi1>, vector<8x241xf32>
    %159 = arith.truncf %158 : vector<8x241xf32> to vector<8x241xbf16>
    %c48 = arith.constant 48 : index
    %c0_55 = arith.constant 0 : index
    %160 = vector.load %arg10[%c48, %c0_55] : memref<72x256xbf16, #tpu.memory_space<vmem>>, vector<8x241xbf16>
    tpu.vector_store %arg10[%c48, %c0_55], %159 {strides = array<i32>} : memref<72x256xbf16, #tpu.memory_space<vmem>>, vector<8x241xbf16>,
    %161 = vector.extract_strided_slice %115 {offsets = [0, 16], sizes = [8, 240], strides = [1, 1]} : vector<8x256xf32> to vector<8x240xf32>
    %162 = arith.truncf %161 : vector<8x240xf32> to vector<8x240xbf16>
    %c56 = arith.constant 56 : index
    %c0_56 = arith.constant 0 : index
    %163 = vector.load %arg10[%c56, %c0_56] : memref<72x256xbf16, #tpu.memory_space<vmem>>, vector<8x240xbf16>
    tpu.vector_store %arg10[%c56, %c0_56], %162 {strides = array<i32>} : memref<72x256xbf16, #tpu.memory_space<vmem>>, vector<8x240xbf16>,
    %164 = vector.extract_strided_slice %115 {offsets = [0, 17], sizes = [8, 239], strides = [1, 1]} : vector<8x256xf32> to vector<8x239xf32>
    %165 = vector.extract_strided_slice %24 {offsets = [0, 0], sizes = [1, 239], strides = [1, 1]} : vector<1x256xi1> to vector<1x239xi1>
    %cst_57 = arith.constant 0.000000e+00 : f32
    %166 = vector.shape_cast %165 : vector<1x239xi1> to vector<1x239xi1>
    %167 = vector.broadcast %166 : vector<1x239xi1> to vector<8x239xi1>
    %168 = vector.broadcast %cst_57 : f32 to vector<8x239xf32>
    %169 = arith.select %167, %164, %168 : vector<8x239xi1>, vector<8x239xf32>
    %170 = arith.truncf %169 : vector<8x239xf32> to vector<8x239xbf16>
    %c64 = arith.constant 64 : index
    %c0_58 = arith.constant 0 : index
    %171 = vector.load %arg10[%c64, %c0_58] : memref<72x256xbf16, #tpu.memory_space<vmem>>, vector<8x239xbf16>
    tpu.vector_store %arg10[%c64, %c0_58], %170 {strides = array<i32>} : memref<72x256xbf16, #tpu.memory_space<vmem>>, vector<8x239xbf16>,
    %c0_59 = arith.constant 0 : index
    %c0_60 = arith.constant 0 : index
    %172 = vector.load %arg5[%c0_59, %c0_60] : memref<8x72xbf16, #tpu.memory_space<vmem>>, vector<8x72xbf16>
    %c0_61 = arith.constant 0 : index
    %c0_62 = arith.constant 0 : index
    %173 = vector.load %arg10[%c0_61, %c0_62] : memref<72x256xbf16, #tpu.memory_space<vmem>>, vector<72x256xbf16>
    %cst_63 = arith.constant dense<0.000000e+00> : vector<8x256xf32>
    %174 = tpu.matmul %172, %173, %cst_63 {dimension_numbers = #tpu.dot_dimension_numbers<[1], [0], [0], [1], [0, 0, 1, 1], [], []>} : vector<8x72xbf16>, vector<72x256xbf16>, vector<8x256xf32> -> vector<8x256xf32>
    %c0_64 = arith.constant 0 : index
    %c0_65 = arith.constant 0 : index
    %175 = vector.load %arg6[%c0_64, %c0_65] : memref<8x1xf32, #tpu.memory_space<vmem>>, vector<8x1xf32>
    %c0_66 = arith.constant 0 : index
    %c0_67 = arith.constant 0 : index
    %176 = vector.load %arg7[%c0_66, %c0_67] : memref<8x1xf32, #tpu.memory_space<vmem>>, vector<8x1xf32>
    %177 = vector.shape_cast %174 : vector<8x256xf32> to vector<1x8x256xf32>
    %cst_68 = arith.constant dense<0.000000e+00> : vector<1xf32>
    %178 = vector.multi_reduction <add>, %177, %cst_68 [1, 2] : vector<1x8x256xf32> to vector<1xf32>
    %179 = vector.shape_cast %178 : vector<1xf32> to vector<1x1x1xf32>
    %180 = vector.extract %179[0, 0, 0] : f32 from vector<1x1x1xf32>
    %181 = vector.broadcast %180 : f32 to vector<1x1xf32>
    %cst_69 = arith.constant 2.048000e+03 : f32
    %182 = vector.broadcast %cst_69 : f32 to vector<1x1xf32>
    %183 = arith.divf %181, %182 : vector<1x1xf32>
    %184 = vector.broadcast %183 : vector<1x1xf32> to vector<8x256xf32>
    %185 = arith.subf %174, %184 : vector<8x256xf32>
    %186 = arith.mulf %185, %185 : vector<8x256xf32>
    %187 = vector.shape_cast %186 : vector<8x256xf32> to vector<1x8x256xf32>
    %cst_70 = arith.constant dense<0.000000e+00> : vector<1xf32>
    %188 = vector.multi_reduction <add>, %187, %cst_70 [1, 2] : vector<1x8x256xf32> to vector<1xf32>
    %189 = vector.shape_cast %188 : vector<1xf32> to vector<1x1x1xf32>
    %190 = vector.extract %189[0, 0, 0] : f32 from vector<1x1x1xf32>
    %191 = vector.broadcast %190 : f32 to vector<1x1xf32>
    %cst_71 = arith.constant 2.048000e+03 : f32
    %192 = vector.broadcast %cst_71 : f32 to vector<1x1xf32>
    %193 = arith.divf %191, %192 : vector<1x1xf32>
    %cst_72 = arith.constant 9.99999974E-6 : f32
    %194 = vector.broadcast %cst_72 : f32 to vector<1x1xf32>
    %195 = arith.addf %193, %194 : vector<1x1xf32>
    %196 = math.rsqrt %195 : vector<1x1xf32>
    %197 = vector.broadcast %196 : vector<1x1xf32> to vector<8x256xf32>
    %198 = arith.mulf %185, %197 : vector<8x256xf32>
    %199 = vector.broadcast %175 : vector<8x1xf32> to vector<8x256xf32>
    %200 = arith.mulf %198, %199 : vector<8x256xf32>
    %201 = vector.broadcast %176 : vector<8x1xf32> to vector<8x256xf32>
    %202 = arith.addf %200, %201 : vector<8x256xf32>
    %c0_73 = arith.constant 0 : index
    %c0_74 = arith.constant 0 : index
    %c0_75 = arith.constant 0 : index
    %203 = vector.load %arg8[%c0_73, %c0_74, %c0_75] : memref<1x8x256xf32, #tpu.memory_space<vmem>>, vector<1x8x256xf32>
    %204 = vector.shape_cast %203 : vector<1x8x256xf32> to vector<8x256xf32>
    %205 = vector.shape_cast %202 : vector<8x256xf32> to vector<1x8x256xf32>
    tpu.vector_store %arg8[%c0_73, %c0_74, %c0_75], %205 {strides = array<i32>} : memref<1x8x256xf32, #tpu.memory_space<vmem>>, vector<1x8x256xf32>,
    return
  }
  func.func @transform_0(%arg0: i32) -> (i32, i32, i32) {
    %c0_i32 = arith.constant 0 : i32
    %c0_i32_0 = arith.constant 0 : i32
    %c0_i32_1 = arith.constant 0 : i32
    return %arg0, %c0_i32, %c0_i32_0 : i32, i32, i32
  }
  func.func @transform_1(%arg0: i32) -> (i32, i32) {
    %c0_i32 = arith.constant 0 : i32
    %c0_i32_0 = arith.constant 0 : i32
    %c0_i32_1 = arith.constant 0 : i32
    return %c0_i32, %c0_i32_0 : i32, i32
  }
  func.func @transform_2(%arg0: i32) -> (i32, i32) {
    %c0_i32 = arith.constant 0 : i32
    %c0_i32_0 = arith.constant 0 : i32
    %c0_i32_1 = arith.constant 0 : i32
    return %c0_i32, %c0_i32_0 : i32, i32
  }
  func.func @transform_3(%arg0: i32) -> (i32, i32) {
    %c0_i32 = arith.constant 0 : i32
    %c0_i32_0 = arith.constant 0 : i32
    %c0_i32_1 = arith.constant 0 : i32
    return %c0_i32, %c0_i32_0 : i32, i32
  }
  func.func @transform_4(%arg0: i32) -> (i32, i32) {
    %c0_i32 = arith.constant 0 : i32
    %c0_i32_0 = arith.constant 0 : i32
    %c0_i32_1 = arith.constant 0 : i32
    return %c0_i32, %c0_i32_0 : i32, i32
  }
  func.func @transform_5(%arg0: i32) -> (i32, i32) {
    %c0_i32 = arith.constant 0 : i32
    %c0_i32_0 = arith.constant 0 : i32
    %c0_i32_1 = arith.constant 0 : i32
    return %c0_i32, %c0_i32_0 : i32, i32
  }
  func.func @transform_6(%arg0: i32) -> (i32, i32) {
    %c0_i32 = arith.constant 0 : i32
    %c0_i32_0 = arith.constant 0 : i32
    %c0_i32_1 = arith.constant 0 : i32
    return %c0_i32, %c0_i32_0 : i32, i32
  }
  func.func @transform_7(%arg0: i32) -> (i32, i32, i32) {
    %c0_i32 = arith.constant 0 : i32
    %c0_i32_0 = arith.constant 0 : i32
    %c0_i32_1 = arith.constant 0 : i32
    return %arg0, %c0_i32, %c0_i32_0 : i32, i32, i32
  }
}

</mosaic_0001>

<llo_original>
// kernel: tpu_custom_call.1
$region0: #{tpu_custom_call.1}
  #allocation0 [shape = 'u32[]', space=smem, size = 0x4, offset = 0x4, fixed_abs, tag = 'smem constant byte address 0x4 - core index']
  #allocation1 [shape = 'u32[144,128]{1,0:T(1,128)}', space=vmem, size = 0x12000, scoped, tag = 'internal scratch']
  #allocation2 [shape = 'bf16[36,256]{1,0:T(8,128)(2,1)}', space=vmem, size = 0x5000, scoped, tag = 'scratch operand']
  #allocation3 [shape = 'bf16[72,256]{1,0:T(8,128)(2,1)}', space=vmem, size = 0x9000, scoped, tag = 'scratch operand']
  %s0 = inlined_call_operand.vmem [shape: f32[2,4,256], index: 0, kind: input, shape index: {}]
  %s1 = inlined_call_operand.vmem [shape: bf16[8,36], index: 1, kind: input, shape index: {}]
  %s2 = inlined_call_operand.vmem [shape: f32[8,1], index: 2, kind: input, shape index: {}]
  %s3 = inlined_call_operand.vmem [shape: f32[8,1], index: 3, kind: input, shape index: {}]
  %s4 = inlined_call_operand.vmem [shape: bf16[8,72], index: 4, kind: input, shape index: {}]
  %s5 = inlined_call_operand.vmem [shape: f32[8,1], index: 5, kind: input, shape index: {}]
  %s6 = inlined_call_operand.vmem [shape: f32[8,1], index: 6, kind: input, shape index: {}]
  %s7 = inlined_call_operand.hbm [shape: f32[2,8,256], index: 7, kind: output, shape index: {}]
  %s8 = sld [smem:[#allocation0]]
  $region61: #{tpu_custom_call.1} parent=0
    _
  %s10 = ssub.s32 1, %s8
  %s11 = scalar_select 0, %s10, %s8
  $region1: #{tpu_custom_call.1} parent=0
    #allocation4 [shape = 'u8[16384]{0}', space=vmem, size = 0x4000, scoped, tag = 'output window, operand 0']
    #allocation5 [shape = 's32[2]{0}', space=sflag, size = 0x8, scoped, tag = 'scoped memory for tpu_custom_call.1']
    %12 = vsyncpa [#allocation5], 0
    %s13 = scalar_lea.sflag [#allocation5], 1
    %14 = vsyncpa %s13, 0
    loop: start=0, step=1, limit=4
    $region2: #{tpu_custom_call.1} parent=1 // loop_pre_header
      _
    $region3: #{tpu_custom_call.1} parent=1 // loop_header
      %s16 = sphi 0, %s20
      %p17 = scmp.ge.s32.totalorder %s16, 4
      %s26 = sphi 0, %s28
      %s29 = sphi 0, %s26
      %s30 = sphi 0, %s29
      %s46 = sphi 0, %s30
      %s50 = sphi 0, %s50
      %s52 = sphi 0, %s50
      %s53 = sphi 0, %s52
      %s67 = sphi 0, %s53
      %s71 = sphi 0, %s71
      %s73 = sphi 0, %s71
      %s74 = sphi 0, %s73
      %s88 = sphi 0, %s74
      %s92 = sphi 0, %s92
      %s94 = sphi 0, %s92
      %s95 = sphi 0, %s94
      %s109 = sphi 0, %s95
      %s113 = sphi 0, %s113
      %s115 = sphi 0, %s113
      %s116 = sphi 0, %s115
      %s130 = sphi 0, %s116
      %s134 = sphi 0, %s134
      %s136 = sphi 0, %s134
      %s137 = sphi 0, %s136
      %s151 = sphi 0, %s137
      %s155 = sphi 0, %s155
      %s157 = sphi 0, %s155
      %s158 = sphi 0, %s157
      %s172 = sphi 0, %s158
      %s178 = sphi 0, %s180
      %s181 = sphi 0, %s178
      %s182 = sphi 0, %s181
      %s198 = sphi 0, %s182
    $region4: #{tpu_custom_call.1} parent=1 // loop_header_branch
      %19 = sbr.rel (%p17) target = $region8
    $region5: #{tpu_custom_call.1} parent=1 // loop_body
      %s21 = ssub.s32 %s16, 1
      %s22 = ssub.s32 %s16, 2
      %s23 = sadd.s32 %s16, 1
      %s24 = ssub.s32 %s16, %s23
      %p25 = scmp.eq.s32.totalorder %s24, 0
      %s27 = sadd.s32 %s26, 1
      %s28 = scalar_select %p25, %s26, %s27
      %p31 = pneg %p25
      %p32 = scmp.eq.s32.totalorder %s16, 1
      %p33 = por %p31, %p32
      %p34 = scmp.ne.s32.totalorder %s26, %s29
      %p35 = scmp.eq.s32.totalorder %s16, 0
      %p36 = por %p34, %p35
      %p37 = scmp.ne.s32.totalorder %s26, %s29
      %p38 = scmp.eq.s32.totalorder %s21, 1
      %p39 = por %p37, %p38
      %p40 = scmp.ne.s32.totalorder %s29, %s30
      %p41 = scmp.eq.s32.totalorder %s21, 0
      %p42 = por %p40, %p41
      %p43 = scmp.ne.s32.totalorder %s29, %s30
      %p44 = scmp.eq.s32.totalorder %s22, 1
      %p45 = por %p43, %p44
      %p47 = scmp.ne.s32.totalorder %s30, %s46
      %p48 = scmp.eq.s32.totalorder %s22, 0
      %p49 = por %p47, %p48
      %s51 = sadd.s32 %s50, 1
      %p54 = scmp.eq.s32.totalorder %s16, 1
      %p55 = scmp.ne.s32.totalorder %s50, %s52
      %p56 = scmp.eq.s32.totalorder %s16, 0
      %p57 = por %p55, %p56
      %p58 = scmp.ne.s32.totalorder %s50, %s52
      %p59 = scmp.eq.s32.totalorder %s21, 1
      %p60 = por %p58, %p59
      %p61 = scmp.ne.s32.totalorder %s52, %s53
      %p62 = scmp.eq.s32.totalorder %s21, 0
      %p63 = por %p61, %p62
      %p64 = scmp.ne.s32.totalorder %s52, %s53
      %p65 = scmp.eq.s32.totalorder %s22, 1
      %p66 = por %p64, %p65
      %p68 = scmp.ne.s32.totalorder %s53, %s67
      %p69 = scmp.eq.s32.totalorder %s22, 0
      %p70 = por %p68, %p69
      %s72 = sadd.s32 %s71, 1
      %p75 = scmp.eq.s32.totalorder %s16, 1
      %p76 = scmp.ne.s32.totalorder %s71, %s73
      %p77 = scmp.eq.s32.totalorder %s16, 0
      %p78 = por %p76, %p77
      %p79 = scmp.ne.s32.totalorder %s71, %s73
      %p80 = scmp.eq.s32.totalorder %s21, 1
      %p81 = por %p79, %p80
      %p82 = scmp.ne.s32.totalorder %s73, %s74
      %p83 = scmp.eq.s32.totalorder %s21, 0
      %p84 = por %p82, %p83
      %p85 = scmp.ne.s32.totalorder %s73, %s74
      %p86 = scmp.eq.s32.totalorder %s22, 1
      %p87 = por %p85, %p86
      %p89 = scmp.ne.s32.totalorder %s74, %s88
      %p90 = scmp.eq.s32.totalorder %s22, 0
      %p91 = por %p89, %p90
      %s93 = sadd.s32 %s92, 1
      %p96 = scmp.eq.s32.totalorder %s16, 1
      %p97 = scmp.ne.s32.totalorder %s92, %s94
      %p98 = scmp.eq.s32.totalorder %s16, 0
      %p99 = por %p97, %p98
      %p100 = scmp.ne.s32.totalorder %s92, %s94
      %p101 = scmp.eq.s32.totalorder %s21, 1
      %p102 = por %p100, %p101
      %p103 = scmp.ne.s32.totalorder %s94, %s95
      %p104 = scmp.eq.s32.totalorder %s21, 0
      %p105 = por %p103, %p104
      %p106 = scmp.ne.s32.totalorder %s94, %s95
      %p107 = scmp.eq.s32.totalorder %s22, 1
      %p108 = por %p106, %p107
      %p110 = scmp.ne.s32.totalorder %s95, %s109
      %p111 = scmp.eq.s32.totalorder %s22, 0
      %p112 = por %p110, %p111
      %s114 = sadd.s32 %s113, 1
      %p117 = scmp.eq.s32.totalorder %s16, 1
      %p118 = scmp.ne.s32.totalorder %s113, %s115
      %p119 = scmp.eq.s32.totalorder %s16, 0
      %p120 = por %p118, %p119
      %p121 = scmp.ne.s32.totalorder %s113, %s115
      %p122 = scmp.eq.s32.totalorder %s21, 1
      %p123 = por %p121, %p122
      %p124 = scmp.ne.s32.totalorder %s115, %s116
      %p125 = scmp.eq.s32.totalorder %s21, 0
      %p126 = por %p124, %p125
      %p127 = scmp.ne.s32.totalorder %s115, %s116
      %p128 = scmp.eq.s32.totalorder %s22, 1
      %p129 = por %p127, %p128
      %p131 = scmp.ne.s32.totalorder %s116, %s130
      %p132 = scmp.eq.s32.totalorder %s22, 0
      %p133 = por %p131, %p132
      %s135 = sadd.s32 %s134, 1
      %p138 = scmp.eq.s32.totalorder %s16, 1
      %p139 = scmp.ne.s32.totalorder %s134, %s136
      %p140 = scmp.eq.s32.totalorder %s16, 0
      %p141 = por %p139, %p140
      %p142 = scmp.ne.s32.totalorder %s134, %s136
      %p143 = scmp.eq.s32.totalorder %s21, 1
      %p144 = por %p142, %p143
      %p145 = scmp.ne.s32.totalorder %s136, %s137
      %p146 = scmp.eq.s32.totalorder %s21, 0
      %p147 = por %p145, %p146
      %p148 = scmp.ne.s32.totalorder %s136, %s137
      %p149 = scmp.eq.s32.totalorder %s22, 1
      %p150 = por %p148, %p149
      %p152 = scmp.ne.s32.totalorder %s137, %s151
      %p153 = scmp.eq.s32.totalorder %s22, 0
      %p154 = por %p152, %p153
      %s156 = sadd.s32 %s155, 1
      %p159 = scmp.eq.s32.totalorder %s16, 1
      %p160 = scmp.ne.s32.totalorder %s155, %s157
      %p161 = scmp.eq.s32.totalorder %s16, 0
      %p162 = por %p160, %p161
      %p163 = scmp.ne.s32.totalorder %s155, %s157
      %p164 = scmp.eq.s32.totalorder %s21, 1
      %p165 = por %p163, %p164
      %p166 = scmp.ne.s32.totalorder %s157, %s158
      %p167 = scmp.eq.s32.totalorder %s21, 0
      %p168 = por %p166, %p167
      %p169 = scmp.ne.s32.totalorder %s157, %s158
      %p170 = scmp.eq.s32.totalorder %s22, 1
      %p171 = por %p169, %p170
      %p173 = scmp.ne.s32.totalorder %s158, %s172
      %p174 = scmp.eq.s32.totalorder %s22, 0
      %p175 = por %p173, %p174
      %s176 = ssub.s32 %s16, %s23
      %p177 = scmp.eq.s32.totalorder %s176, 0
      %s179 = sadd.s32 %s178, 1
      %s180 = scalar_select %p177, %s178, %s179
      %p183 = pneg %p177
      %p184 = scmp.eq.s32.totalorder %s16, 1
      %p185 = por %p183, %p184
      %p186 = scmp.ne.s32.totalorder %s178, %s181
      %p187 = scmp.eq.s32.totalorder %s16, 0
      %p188 = por %p186, %p187
      %p189 = scmp.ne.s32.totalorder %s178, %s181
      %p190 = scmp.eq.s32.totalorder %s21, 1
      %p191 = por %p189, %p190
      %p192 = scmp.ne.s32.totalorder %s181, %s182
      %p193 = scmp.eq.s32.totalorder %s21, 0
      %p194 = por %p192, %p193
      %p195 = scmp.ne.s32.totalorder %s181, %s182
      %p196 = scmp.eq.s32.totalorder %s22, 1
      %p197 = por %p195, %p196
      %p199 = scmp.ne.s32.totalorder %s182, %s198
      %p200 = scmp.eq.s32.totalorder %s22, 0
      %p201 = por %p199, %p200
      %p202 = scmp.le.s32.totalorder 1, %s16
      %p203 = scmp.lt.s32.totalorder %s16, 3
      %p204 = pnand %p202, %p203
      %p205 = pneg %p204
      // Predicated region
      $region9: #{tpu_custom_call.1} parent=5 // pred_check
        _
      $region10: #{tpu_custom_call.1} parent=5 // pred_check_branch
        %207 = sbr.rel (%p204) target = $region12
      $region11: #{tpu_custom_call.1} parent=5 // pred_region
        %s208 = ssub.s32 %s16, 1
        // Predicated region
        $region13: #{tpu_custom_call.1} parent=11 // pred_check
          %p209 = pneg %p63
        $region14: #{tpu_custom_call.1} parent=11 // pred_check_branch
          %211 = sbr.rel (%p209) target = $region16
        $region15: #{tpu_custom_call.1} parent=11 // pred_region
          _
        $region16: #{tpu_custom_call.1} parent=11 // pred_fallthru
          _
        // Predicated region
        $region17: #{tpu_custom_call.1} parent=11 // pred_check
          %p212 = pneg %p84
        $region18: #{tpu_custom_call.1} parent=11 // pred_check_branch
          %214 = sbr.rel (%p212) target = $region20
        $region19: #{tpu_custom_call.1} parent=11 // pred_region
          _
        $region20: #{tpu_custom_call.1} parent=11 // pred_fallthru
          _
        // Predicated region
        $region21: #{tpu_custom_call.1} parent=11 // pred_check
          %p215 = pneg %p105
        $region22: #{tpu_custom_call.1} parent=11 // pred_check_branch
          %217 = sbr.rel (%p215) target = $region24
        $region23: #{tpu_custom_call.1} parent=11 // pred_region
          _
        $region24: #{tpu_custom_call.1} parent=11 // pred_fallthru
          _
        // Predicated region
        $region25: #{tpu_custom_call.1} parent=11 // pred_check
          %p218 = pneg %p126
        $region26: #{tpu_custom_call.1} parent=11 // pred_check_branch
          %220 = sbr.rel (%p218) target = $region28
        $region27: #{tpu_custom_call.1} parent=11 // pred_region
          _
        $region28: #{tpu_custom_call.1} parent=11 // pred_fallthru
          _
        // Predicated region
        $region29: #{tpu_custom_call.1} parent=11 // pred_check
          %p221 = pneg %p147
        $region30: #{tpu_custom_call.1} parent=11 // pred_check_branch
          %223 = sbr.rel (%p221) target = $region32
        $region31: #{tpu_custom_call.1} parent=11 // pred_region
          _
        $region32: #{tpu_custom_call.1} parent=11 // pred_fallthru
          _
        // Predicated region
        $region33: #{tpu_custom_call.1} parent=11 // pred_check
          %p224 = pneg %p168
        $region34: #{tpu_custom_call.1} parent=11 // pred_check_branch
          %226 = sbr.rel (%p224) target = $region36
        $region35: #{tpu_custom_call.1} parent=11 // pred_region
          _
        $region36: #{tpu_custom_call.1} parent=11 // pred_fallthru
          _
      $region12: #{tpu_custom_call.1} parent=5 // pred_fallthru
        _
      %p227 = scmp.lt.s32.totalorder %s16, 2
      // Predicated region
      $region37: #{tpu_custom_call.1} parent=5 // pred_check
        %p228 = pneg %p227
      $region38: #{tpu_custom_call.1} parent=5 // pred_check_branch
        %230 = sbr.rel (%p228) target = $region40
      $region39: #{tpu_custom_call.1} parent=5 // pred_region
        // Predicated region
        $region41: #{tpu_custom_call.1} parent=39 // pred_check
          %p231 = pneg %p36
        $region42: #{tpu_custom_call.1} parent=39 // pred_check_branch
          %233 = sbr.rel (%p231) target = $region44
        $region43: #{tpu_custom_call.1} parent=39 // pred_region
          %p234 = scmp.lt.s32.totalorder %s16, 1
          %s235 = scalar_select %p234, %s16, 1
          %s236 = smul.addr %s235, 2
          %s237 = smul.addr %s236, 4
          %s238 = scalar_lea.vmem %s0, %s237
        $region44: #{tpu_custom_call.1} parent=39 // pred_fallthru
          _
      $region40: #{tpu_custom_call.1} parent=5 // pred_fallthru
        _
      %p239 = scmp.le.s32.totalorder 1, %s16
      %p240 = scmp.lt.s32.totalorder %s16, 3
      %p241 = pnand %p239, %p240
      %p242 = pneg %p241
      // Predicated region
      $region45: #{tpu_custom_call.1} parent=5 // pred_check
        _
      $region46: #{tpu_custom_call.1} parent=5 // pred_check_branch
        %244 = sbr.rel (%p241) target = $region48
      $region47: #{tpu_custom_call.1} parent=5 // pred_region
        %s245 = ssub.s32 %s16, 1
        %p246 = scmp.lt.s32.totalorder %s21, 1
        %s247 = scalar_select %p246, %s21, 1
        %s248 = smul.addr %s247, 2
        %s249 = smul.addr %s248, 4
        %s250 = scalar_lea.vmem %s0, %s249
        %p251 = pneg %p42
        %p252 = pneg %p39
        %p253 = pneg %p63
        %p254 = pneg %p60
        %p255 = pneg %p84
        %p256 = pneg %p81
        %p257 = pneg %p105
        %p258 = pneg %p102
        %p259 = pneg %p126
        %p260 = pneg %p123
        %p261 = pneg %p147
        %p262 = pneg %p144
        %p263 = pneg %p168
        %p264 = pneg %p165
        %p265 = pneg %p194
        %p266 = pneg %p191
        %s267 = sand.u32 %s181, 1
        %s268 = scalar_lea.sflag [#allocation5], %s267
        %s269 = sand.u32 %s181, 1
        %s270 = smul.addr %s269, 16
        %s271 = scalar_lea.vmem [#allocation4], %s270
        %p272 = scmp.lt.s32.totalorder %s21, 1
        %s273 = scalar_select %p272, %s21, 1
        %s274 = smul.addr %s273, 2
        %s275 = smul.addr %s274, 4
        %s276 = scalar_lea.vmem %s0, %s275
        %278 = vst [vmem:[#allocation2] sm:$0xff] 0
        %279 = vst [vmem:[#allocation2 + $0x8] sm:$0xff] 0
        %280 = vst [vmem:[#allocation2 + $0x10] sm:$0xff] 0
        %281 = vst [vmem:[#allocation2 + $0x18] sm:$0xff] 0
        %282 = vst [vmem:[#allocation2 + $0x20] sm:$0x33] 0
        %283 = vst [vmem:[#allocation3] sm:$0xff] 0
        %284 = vst [vmem:[#allocation3 + $0x8] sm:$0xff] 0
        %285 = vst [vmem:[#allocation3 + $0x10] sm:$0xff] 0
        %286 = vst [vmem:[#allocation3 + $0x18] sm:$0xff] 0
        %287 = vst [vmem:[#allocation3 + $0x20] sm:$0xff] 0
        %288 = vst [vmem:[#allocation3 + $0x28] sm:$0xff] 0
        %289 = vst [vmem:[#allocation3 + $0x30] sm:$0xff] 0
        %290 = vst [vmem:[#allocation3 + $0x38] sm:$0xff] 0
        %291 = vst [vmem:[#allocation3 + $0x40] sm:$0xff] 0
        %v292 = vlaneseq
        %v293 = vand.u32 %v292, 127
        %v294 = vadd.s32 %v293, 128
        %vm295 = vcmp.lt.s32.totalorder %v293, 0
        %v296 = vsub.s32 0, %v293
        %v297 = vsel %vm295, %v296, %v293
        %v298 = vshrl.u32 %v297, 4
        %v299 = vand.u32 %v297, 15
        %v300 = vsub.s32 0, %v299
        %v301 = vsel %vm295, %v300, %v299
        %vm302 = vcmp.lt.s32.totalorder %v294, 0
        %v303 = vsub.s32 0, %v294
        %v304 = vsel %vm302, %v303, %v294
        %v305 = vshrl.u32 %v304, 4
        %v306 = vand.u32 %v304, 15
        %v307 = vsub.s32 0, %v306
        %v308 = vsel %vm302, %v307, %v306
        %vm309 = vcmp.ne.s32.totalorder %v301, 0
        %vm310 = vcmp.ne.s32.totalorder %v308, 0
        %vm311 = vcmp.lt.s32.totalorder %v301, 0
        %vm312 = vcmp.lt.s32.totalorder %v308, 0
        %vm313 = vmand %vm311, %vm309
        %vm314 = vmand %vm312, %vm310
        %v315 = vadd.s32 %v301, 16
        %v316 = vadd.s32 %v308, 16
        %v317 = vsel %vm313, %v315, %v301
        %v318 = vsel %vm314, %v316, %v308
        %vm319 = vcmp.ge.s32.totalorder %v317, 1
        %vm320 = vcmp.ge.s32.totalorder %v318, 1
        %vm321 = vcmp.lt.s32.totalorder %v317, 15
        %vm322 = vcmp.lt.s32.totalorder %v318, 15
        %v323 = vld [vmem:[%s276] sm:$0xff]
        %v324 = vsel %vm319, 1, 0
        %v325 = vsel %vm320, 1, 0
        %vm326 = vcmp.eq.s32.totalorder %v324, 1
        %vm327 = vcmp.eq.s32.totalorder %v325, 1
        %v329 = vcombine.high %v323, %v323
        %330 = vrot.lane.b32.xlu0 %v323, 17
        %v331 = vpop.permute.xlu0 %330
        %332 = vrot.lane.b32.xlu0 %v329, 17
        %v333 = vpop.permute.xlu0 %332
        %vm334 = vcmask 138240
        %v335 = vsel %vm334, %v331, %v333
        %v338 = vsel %vm326, %v331, 0.0
        %v339 = vsel %vm327, %v335, 0.0
        %v340 = vpack.c.bf16 %v338, %v338
        %v341 = vpack.c.bf16 %v339, %v339
        %v344 = vunpack.c.l.b16 %v340
        %v345 = vunpack.c.l.b16 %v341
        %v346 = vpack.c.b16 %v345, %v344
        %vm348 = vcmask 1041544
        %vm349 = vcmask 1045508
        %vm350 = vmor %vm349, %vm348
        %351 = vst.msk [vmem:[#allocation2] sm:$0x33] %vm350, %v346
        %v353 = vpack.c.bf16 %v323, %v323
        %v354 = vpack.c.bf16 %v329, %v329
        %v357 = vunpack.c.l.b16 %v353
        %v358 = vunpack.c.l.b16 %v354
        %v359 = vpack.c.b16 %v358, %v357
        %v360 = vrot.slane %v359, 6
        %361 = vrot.lane.b32.xlu0 %v360, 16
        %v362 = vpop.permute.xlu0 %361
        %v363 = vrot.slane %v362, 4
        %vm364 = vcmask 130048
        %v365 = vsel %vm364, %v363, %v362
        %vm367 = vcmask 1043586
        %vm368 = vcmask 1047558
        %vm369 = vmor %vm368, %vm367
        %370 = vst.msk [vmem:[#allocation2] sm:$0xcc] %vm369, %v365
        %v371 = vsel %vm321, 1, 0
        %v372 = vsel %vm322, 1, 0
        %vm373 = vcmp.eq.s32.totalorder %v371, 1
        %vm374 = vcmp.eq.s32.totalorder %v372, 1
        %375 = vrot.lane.b32.xlu0 %v323, 15
        %v376 = vpop.permute.xlu0 %375
        %377 = vrot.lane.b32.xlu0 %v329, 15
        %v378 = vpop.permute.xlu0 %377
        %vm379 = vcmask 121856
        %v380 = vsel %vm379, %v376, %v378
        %v383 = vsel %vm373, %v376, 0.0
        %v384 = vsel %vm374, %v380, 0.0
        %v385 = vpack.c.bf16 %v383, %v383
        %v386 = vpack.c.bf16 %v384, %v384
        %v389 = vunpack.c.l.b16 %v385
        %v390 = vunpack.c.l.b16 %v386
        %v391 = vpack.c.b16 %v390, %v389
        %vm393 = vcmask 1041528
        %vm394 = vmor %vm349, %vm393
        %395 = vst.msk [vmem:[#allocation2 + $0x8] sm:$0x33] %vm394, %v391
        %396 = vrot.lane.b32.xlu0 %v323, 1
        %v397 = vpop.permute.xlu0 %396
        %398 = vrot.lane.b32.xlu0 %v329, 1
        %v399 = vpop.permute.xlu0 %398
        %vm400 = vcmask 7168
        %v401 = vsel %vm400, %v397, %v399
        %v404 = vsel %vm326, %v397, 0.0
        %v405 = vsel %vm327, %v401, 0.0
        %v406 = vpack.c.bf16 %v404, %v404
        %v407 = vpack.c.bf16 %v405, %v405
        %v410 = vunpack.c.l.b16 %v406
        %v411 = vunpack.c.l.b16 %v407
        %v412 = vpack.c.b16 %v411, %v410
        %v413 = vrot.slane %v412, 6
        %vm415 = vcmask 1043466
        %vm416 = vmor %vm368, %vm415
        %417 = vst.msk [vmem:[#allocation2 + $0x8] sm:$0xcc] %vm416, %v413
        %419 = vst [vmem:[#allocation2 + $0x10] sm:$0x33] %v359
        %420 = vrot.lane.b32.xlu0 %v323, 127
        %v421 = vpop.permute.xlu0 %420
        %422 = vrot.lane.b32.xlu0 %v329, 127
        %v423 = vpop.permute.xlu0 %422
        %vm424 = vcmask 1039360
        %v425 = vsel %vm424, %v421, %v423
        %v428 = vsel %vm373, %v425, 0.0
        %v429 = vsel %vm374, %v423, 0.0
        %v430 = vpack.c.bf16 %v428, %v428
        %v431 = vpack.c.bf16 %v429, %v429
        %v434 = vunpack.c.l.b16 %v430
        %v435 = vunpack.c.l.b16 %v431
        %v436 = vpack.c.b16 %v435, %v434
        %v437 = vrot.slane %v436, 6
        %vm439 = vcmask 1043458
        %vm440 = vcmask 1039366
        %vm441 = vmor %vm440, %vm439
        %442 = vst.msk [vmem:[#allocation2 + $0x10] sm:$0xcc] %vm441, %v437
        %443 = vrot.lane.b32.xlu0 %v323, 113
        %v444 = vpop.permute.xlu0 %443
        %445 = vrot.lane.b32.xlu0 %v329, 113
        %v446 = vpop.permute.xlu0 %445
        %vm447 = vcmask 924672
        %v448 = vsel %vm447, %v444, %v446
        %v451 = vsel %vm326, %v448, 0.0
        %v452 = vsel %vm327, %v446, 0.0
        %v453 = vpack.c.bf16 %v451, %v451
        %v454 = vpack.c.bf16 %v452, %v452
        %v457 = vunpack.c.l.b16 %v453
        %v458 = vunpack.c.l.b16 %v454
        %v459 = vpack.c.b16 %v458, %v457
        %vm461 = vcmask 1041408
        %vm462 = vcmask 922628
        %vm463 = vmor %vm462, %vm461
        %464 = vst.msk [vmem:[#allocation2 + $0x18] sm:$0x33] %vm463, %v459
        %465 = vrot.lane.b32.xlu0 %v360, 112
        %v466 = vpop.permute.xlu0 %465
        %v467 = vrot.slane %v466, 4
        %vm468 = vcmask 916480
        %v469 = vsel %vm468, %v466, %v467
        %vm471 = vcmask 916486
        %vm472 = vmor %vm471, %vm439
        %473 = vst.msk [vmem:[#allocation2 + $0x18] sm:$0xcc] %vm472, %v469
        %474 = vrot.lane.b32.xlu0 %v323, 111
        %v475 = vpop.permute.xlu0 %474
        %476 = vrot.lane.b32.xlu0 %v329, 111
        %v477 = vpop.permute.xlu0 %476
        %vm478 = vcmask 908288
        %v479 = vsel %vm478, %v475, %v477
        %v482 = vsel %vm373, %v479, 0.0
        %v483 = vsel %vm374, %v477, 0.0
        %v484 = vpack.c.bf16 %v482, %v482
        %v485 = vpack.c.bf16 %v483, %v483
        %v488 = vunpack.c.l.b16 %v484
        %v489 = vunpack.c.l.b16 %v485
        %v490 = vpack.c.b16 %v489, %v488
        %vm492 = vcmask 906244
        %vm493 = vmor %vm492, %vm461
        %494 = vst.msk [vmem:[#allocation2 + $0x20] sm:$0x33] %vm493, %v490
        %v495 = vld [vmem:[%s1] sm:$0xf]
        %v496 = vld [vmem:[#allocation2] sm:$0xff]
        %v497 = vld [vmem:[#allocation2 + $0x8] sm:$0xff]
        %v498 = vld [vmem:[#allocation2 + $0x10] sm:$0xff]
        %v499 = vld [vmem:[#allocation2 + $0x18] sm:$0xff]
        %v500 = vld [vmem:[#allocation2 + $0x20] sm:$0x33]
        %v506 = vunpack.c.l.b16 %v496
        %v507 = vunpack.c.h.b16 %v496
        %v508 = vunpack.c.l.b16 %v497
        %v509 = vunpack.c.h.b16 %v497
        %v510 = vunpack.c.l.b16 %v498
        %v511 = vunpack.c.h.b16 %v498
        %v512 = vunpack.c.l.b16 %v499
        %v513 = vunpack.c.h.b16 %v499
        %v514 = vunpack.c.l.b16 %v500
        %v515 = vunpack.c.h.b16 %v500
        %v516 = vpack.c.b16 %v508, %v506
        %v517 = vpack.c.b16 %v509, %v507
        %v518 = vpack.c.b16 %v512, %v510
        %v519 = vpack.c.b16 %v513, %v511
        %v520 = vpack.c.b16 %v514, %v514
        %v521 = vpack.c.b16 %v515, %v515
        %vm526 = vcmask 293888
        %v528 = vsel %vm526, %v495, 0
        %v531 = vsel %vm461, %v520, 0
        %v534 = vsel %vm461, %v521, 0
        %536 = vmatprep.subr.bf16.mxu0 0
        %537 = vmatpush1.bf16.msra.mxu0 0
        %538 = vmatprep.subr.bf16.mxu0 0
        %539 = vmatpush1.bf16.msra.mxu0 0
        %540 = vmatprep.subr.bf16.mxu0 0
        %541 = vmatpush1.bf16.msra.mxu0 0
        %542 = vmatprep.subr.bf16.mxu0 0
        %543 = vmatpush1.bf16.msra.mxu0 0
        %544 = vmatprep.subr.bf16.mxu0 0
        %545 = vmatpush1.bf16.msra.mxu0 0
        %546 = vmatprep.subr.bf16.mxu0 %v534
        %547 = vmatpush1.bf16.msra.mxu0 %v531
        %548 = vmatprep.subr.bf16.mxu0 %v519
        %549 = vmatpush1.bf16.msra.mxu0 %v518
        %550 = vmatprep.subr.bf16.mxu0 %v517
        %551 = vmatpush1.bf16.msra.mxu0 %v516
        %552 = vmatprep.subr.bf16.mxu0 0
        %553 = vmatpush2.bf16.msra.mxu0 0
        %554 = vmatprep.subr.bf16.mxu0 0
        %555 = vmatpush2.bf16.msra.mxu0 0
        %556 = vmatprep.subr.bf16.mxu0 0
        %557 = vmatpush2.bf16.msra.mxu0 0
        %558 = vmatprep.subr.bf16.mxu0 0
        %559 = vmatpush2.bf16.msra.mxu0 0
        %560 = vmatprep.subr.bf16.mxu0 0
        %561 = vmatpush2.bf16.msra.mxu0 0
        %562 = vmatprep.subr.bf16.mxu0 0
        %563 = vmatpush2.bf16.msra.mxu0 0
        %564 = vmatprep.subr.bf16.mxu0 0
        %565 = vmatpush2.bf16.msra.mxu0 0
        %566 = vmatprep.subr.bf16.mxu0 0
        %567 = vmatpush2.bf16.msra.mxu0 0
        %568 = vmatprep.mubr.bf16.mxu0 0
        %569 = vmatmul.mubr.bf16.gmra.mxu0 %v528
        %v570 = vpop.f32.mrf.mxu0
        %v571 = vadd.f32 0.0, %v570
        %v572 = vpop.f32.mrf.mxu0
        %v573 = vadd.f32 0.0, %v572
        %v574 = vpop.f32.mrf.mxu0
        %v575 = vpop.f32.mrf.mxu0
        %576 = vdwg.mxu0
        %v577 = vld [vmem:[%s2] sm:$0xff]
        %v578 = vld [vmem:[%s3] sm:$0xff]
        %v579 = vadd.f32 %v571, %v573
        %580 = vadd.xlane.f32.xlu0 %v579
        %v581 = vpop.xlane.xlu0 %580
        %v582 = vrot.slane %v581, 4
        %v583 = vadd.f32 %v581, %v582
        %v584 = vrot.slane %v583, 2
        %v585 = vadd.f32 %v583, %v584
        %v586 = vrot.slane %v585, 1
        %v587 = vadd.f32 %v585, %v586
        %s588 = vtos %v587
        %v589 = vstv %s588
        %v590 = vrcp.pop 2048.0
        %v591 = vmul.f32 %v589, %v590
        %v592 = vsub.f32 %v571, %v591
        %v593 = vsub.f32 %v573, %v591
        %v594 = vmul.f32 %v592, %v592
        %v595 = vmul.f32 %v593, %v593
        %v596 = vadd.f32 %v594, %v595
        %597 = vadd.xlane.f32.xlu0 %v596
        %v598 = vpop.xlane.xlu0 %597
        %v599 = vrot.slane %v598, 4
        %v600 = vadd.f32 %v598, %v599
        %v601 = vrot.slane %v600, 2
        %v602 = vadd.f32 %v600, %v601
        %v603 = vrot.slane %v602, 1
        %v604 = vadd.f32 %v602, %v603
        %s605 = vtos %v604
        %v606 = vstv %s605
        %v607 = vmul.f32 %v606, %v590
        %v608 = vadd.f32 %v607, 1e-05
        %v609 = vrsqrt.pop %v608
        %v610 = vmul.f32 %v592, %v609
        %v611 = vmul.f32 %v593, %v609
        %613 = vset.pattern.permute.xlu0 0
        %614 = vperm.xlu0 %613, %v577
        %v615 = vpop.permute.xlu0 %614
        %v617 = vmul.f32 %v610, %v615
        %v618 = vmul.f32 %v611, %v615
        %620 = vset.pattern.permute.xlu0 0
        %621 = vperm.xlu0 %620, %v578
        %v622 = vpop.permute.xlu0 %621
        %v624 = vadd.f32 %v617, %v622
        %v625 = vadd.f32 %v618, %v622
        %v626 = vmax.f32 %v624, 0.0
        %v627 = vmax.f32 %v625, 0.0
        %630 = vrot.lane.b32.xlu0 %v626, 17
        %v631 = vpop.permute.xlu0 %630
        %632 = vrot.lane.b32.xlu0 %v627, 17
        %v633 = vpop.permute.xlu0 %632
        %v634 = vsel %vm334, %v631, %v633
        %v637 = vsel %vm326, %v631, 0.0
        %v638 = vsel %vm327, %v634, 0.0
        %v639 = vpack.c.bf16 %v637, %v637
        %v640 = vpack.c.bf16 %v638, %v638
        %v643 = vunpack.c.l.b16 %v639
        %v644 = vunpack.c.l.b16 %v640
        %v645 = vpack.c.b16 %v644, %v643
        %vm647 = vcmask 1043592
        %vm648 = vcmask 1047556
        %vm649 = vmor %vm648, %vm647
        %650 = vst.msk [vmem:[#allocation3] sm:$0xff] %vm649, %v645
        %v651 = vpack.c.bf16 %v626, %v626
        %v652 = vpack.c.bf16 %v627, %v627
        %v655 = vunpack.c.l.b16 %v651
        %v656 = vunpack.c.l.b16 %v652
        %v657 = vpack.c.b16 %v656, %v655
        %658 = vrot.lane.b32.xlu0 %v657, 16
        %v659 = vpop.permute.xlu0 %658
        %v660 = vrot.slane %v659, 4
        %v661 = vsel %vm364, %v660, %v659
        %vm663 = vcmask 1043584
        %vm664 = vmor %vm648, %vm663
        %665 = vst.msk [vmem:[#allocation3 + $0x8] sm:$0xff] %vm664, %v661
        %666 = vrot.lane.b32.xlu0 %v626, 15
        %v667 = vpop.permute.xlu0 %666
        %668 = vrot.lane.b32.xlu0 %v627, 15
        %v669 = vpop.permute.xlu0 %668
        %v670 = vsel %vm379, %v667, %v669
        %v673 = vsel %vm373, %v667, 0.0
        %v674 = vsel %vm374, %v670, 0.0
        %v675 = vpack.c.bf16 %v673, %v673
        %v676 = vpack.c.bf16 %v674, %v674
        %v679 = vunpack.c.l.b16 %v675
        %v680 = vunpack.c.l.b16 %v676
        %v681 = vpack.c.b16 %v680, %v679
        %vm683 = vcmask 1043576
        %vm684 = vmor %vm648, %vm683
        %685 = vst.msk [vmem:[#allocation3 + $0x10] sm:$0xff] %vm684, %v681
        %686 = vrot.lane.b32.xlu0 %v626, 1
        %v687 = vpop.permute.xlu0 %686
        %688 = vrot.lane.b32.xlu0 %v627, 1
        %v689 = vpop.permute.xlu0 %688
        %v690 = vsel %vm400, %v687, %v689
        %v693 = vsel %vm326, %v687, 0.0
        %v694 = vsel %vm327, %v690, 0.0
        %v695 = vpack.c.bf16 %v693, %v693
        %v696 = vpack.c.bf16 %v694, %v694
        %v699 = vunpack.c.l.b16 %v695
        %v700 = vunpack.c.l.b16 %v696
        %v701 = vpack.c.b16 %v700, %v699
        %vm703 = vcmask 1043464
        %vm704 = vmor %vm648, %vm703
        %705 = vst.msk [vmem:[#allocation3 + $0x18] sm:$0xff] %vm704, %v701
        %707 = vst [vmem:[#allocation3 + $0x20] sm:$0xff] %v657
        %708 = vrot.lane.b32.xlu0 %v626, 127
        %v709 = vpop.permute.xlu0 %708
        %710 = vrot.lane.b32.xlu0 %v627, 127
        %v711 = vpop.permute.xlu0 %710
        %v712 = vsel %vm424, %v709, %v711
        %v715 = vsel %vm373, %v712, 0.0
        %v716 = vsel %vm374, %v711, 0.0
        %v717 = vpack.c.bf16 %v715, %v715
        %v718 = vpack.c.bf16 %v716, %v716
        %v721 = vunpack.c.l.b16 %v717
        %v722 = vunpack.c.l.b16 %v718
        %v723 = vpack.c.b16 %v722, %v721
        %vm725 = vcmask 1043456
        %vm726 = vcmask 1039364
        %vm727 = vmor %vm726, %vm725
        %728 = vst.msk [vmem:[#allocation3 + $0x28] sm:$0xff] %vm727, %v723
        %729 = vrot.lane.b32.xlu0 %v626, 113
        %v730 = vpop.permute.xlu0 %729
        %731 = vrot.lane.b32.xlu0 %v627, 113
        %v732 = vpop.permute.xlu0 %731
        %v733 = vsel %vm447, %v730, %v732
        %v736 = vsel %vm326, %v733, 0.0
        %v737 = vsel %vm327, %v732, 0.0
        %v738 = vpack.c.bf16 %v736, %v736
        %v739 = vpack.c.bf16 %v737, %v737
        %v742 = vunpack.c.l.b16 %v738
        %v743 = vunpack.c.l.b16 %v739
        %v744 = vpack.c.b16 %v743, %v742
        %vm746 = vcmask 924676
        %vm747 = vmor %vm746, %vm725
        %748 = vst.msk [vmem:[#allocation3 + $0x30] sm:$0xff] %vm747, %v744
        %749 = vrot.lane.b32.xlu0 %v657, 112
        %v750 = vpop.permute.xlu0 %749
        %v751 = vrot.slane %v750, 4
        %v752 = vsel %vm468, %v750, %v751
        %vm754 = vcmask 916484
        %vm755 = vmor %vm754, %vm725
        %756 = vst.msk [vmem:[#allocation3 + $0x38] sm:$0xff] %vm755, %v752
        %757 = vrot.lane.b32.xlu0 %v626, 111
        %v758 = vpop.permute.xlu0 %757
        %759 = vrot.lane.b32.xlu0 %v627, 111
        %v760 = vpop.permute.xlu0 %759
        %v761 = vsel %vm478, %v758, %v760
        %v764 = vsel %vm373, %v761, 0.0
        %v765 = vsel %vm374, %v760, 0.0
        %v766 = vpack.c.bf16 %v764, %v764
        %v767 = vpack.c.bf16 %v765, %v765
        %v770 = vunpack.c.l.b16 %v766
        %v771 = vunpack.c.l.b16 %v767
        %v772 = vpack.c.b16 %v771, %v770
        %vm774 = vcmask 908292
        %vm775 = vmor %vm774, %vm725
        %776 = vst.msk [vmem:[#allocation3 + $0x40] sm:$0xff] %vm775, %v772
        %v777 = vld [vmem:[%s4] sm:$0xf]
        %v778 = vld [vmem:[#allocation3] sm:$0xff]
        %v779 = vld [vmem:[#allocation3 + $0x8] sm:$0xff]
        %v780 = vld [vmem:[#allocation3 + $0x10] sm:$0xff]
        %v781 = vld [vmem:[#allocation3 + $0x18] sm:$0xff]
        %v782 = vld [vmem:[#allocation3 + $0x20] sm:$0xff]
        %v783 = vld [vmem:[#allocation3 + $0x28] sm:$0xff]
        %v784 = vld [vmem:[#allocation3 + $0x30] sm:$0xff]
        %v785 = vld [vmem:[#allocation3 + $0x38] sm:$0xff]
        %v786 = vld [vmem:[#allocation3 + $0x40] sm:$0xff]
        %v796 = vunpack.c.l.b16 %v778
        %v797 = vunpack.c.h.b16 %v778
        %v798 = vunpack.c.l.b16 %v779
        %v799 = vunpack.c.h.b16 %v779
        %v800 = vunpack.c.l.b16 %v780
        %v801 = vunpack.c.h.b16 %v780
        %v802 = vunpack.c.l.b16 %v781
        %v803 = vunpack.c.h.b16 %v781
        %v804 = vunpack.c.l.b16 %v782
        %v805 = vunpack.c.h.b16 %v782
        %v806 = vunpack.c.l.b16 %v783
        %v807 = vunpack.c.h.b16 %v783
        %v808 = vunpack.c.l.b16 %v784
        %v809 = vunpack.c.h.b16 %v784
        %v810 = vunpack.c.l.b16 %v785
        %v811 = vunpack.c.h.b16 %v785
        %v812 = vunpack.c.l.b16 %v786
        %v813 = vunpack.c.h.b16 %v786
        %v814 = vpack.c.b16 %v798, %v796
        %v815 = vpack.c.b16 %v799, %v797
        %v816 = vpack.c.b16 %v802, %v800
        %v817 = vpack.c.b16 %v803, %v801
        %v818 = vpack.c.b16 %v806, %v804
        %v819 = vpack.c.b16 %v807, %v805
        %v820 = vpack.c.b16 %v810, %v808
        %v821 = vpack.c.b16 %v811, %v809
        %v822 = vpack.c.b16 %v812, %v812
        %v823 = vpack.c.b16 %v813, %v813
        %vm832 = vcmask 588800
        %v834 = vsel %vm832, %v777, 0
        %v837 = vsel %vm725, %v822, 0
        %v840 = vsel %vm725, %v823, 0
        %842 = vmatprep.subr.bf16.mxu0 0
        %843 = vmatpush1.bf16.msra.mxu0 0
        %844 = vmatprep.subr.bf16.mxu0 0
        %845 = vmatpush1.bf16.msra.mxu0 0
        %846 = vmatprep.subr.bf16.mxu0 0
        %847 = vmatpush1.bf16.msra.mxu0 0
        %848 = vmatprep.subr.bf16.mxu0 %v840
        %849 = vmatpush1.bf16.msra.mxu0 %v837
        %850 = vmatprep.subr.bf16.mxu0 %v821
        %851 = vmatpush1.bf16.msra.mxu0 %v820
        %852 = vmatprep.subr.bf16.mxu0 %v819
        %853 = vmatpush1.bf16.msra.mxu0 %v818
        %854 = vmatprep.subr.bf16.mxu0 %v817
        %855 = vmatpush1.bf16.msra.mxu0 %v816
        %856 = vmatprep.subr.bf16.mxu0 %v815
        %857 = vmatpush1.bf16.msra.mxu0 %v814
        %858 = vmatprep.subr.bf16.mxu0 0
        %859 = vmatpush2.bf16.msra.mxu0 0
        %860 = vmatprep.subr.bf16.mxu0 0
        %861 = vmatpush2.bf16.msra.mxu0 0
        %862 = vmatprep.subr.bf16.mxu0 0
        %863 = vmatpush2.bf16.msra.mxu0 0
        %864 = vmatprep.subr.bf16.mxu0 0
        %865 = vmatpush2.bf16.msra.mxu0 0
        %866 = vmatprep.subr.bf16.mxu0 0
        %867 = vmatpush2.bf16.msra.mxu0 0
        %868 = vmatprep.subr.bf16.mxu0 0
        %869 = vmatpush2.bf16.msra.mxu0 0
        %870 = vmatprep.subr.bf16.mxu0 0
        %871 = vmatpush2.bf16.msra.mxu0 0
        %872 = vmatprep.subr.bf16.mxu0 0
        %873 = vmatpush2.bf16.msra.mxu0 0
        %874 = vmatprep.mubr.bf16.mxu0 0
        %875 = vmatmul.mubr.bf16.gmra.mxu0 %v834
        %v876 = vpop.f32.mrf.mxu0
        %v877 = vadd.f32 0.0, %v876
        %v878 = vpop.f32.mrf.mxu0
        %v879 = vadd.f32 0.0, %v878
        %v880 = vpop.f32.mrf.mxu0
        %v881 = vpop.f32.mrf.mxu0
        %882 = vdwg.mxu0
        %v883 = vld [vmem:[%s5] sm:$0xff]
        %v884 = vld [vmem:[%s6] sm:$0xff]
        %v885 = vadd.f32 %v877, %v879
        %886 = vadd.xlane.f32.xlu0 %v885
        %v887 = vpop.xlane.xlu0 %886
        %v888 = vrot.slane %v887, 4
        %v889 = vadd.f32 %v887, %v888
        %v890 = vrot.slane %v889, 2
        %v891 = vadd.f32 %v889, %v890
        %v892 = vrot.slane %v891, 1
        %v893 = vadd.f32 %v891, %v892
        %s894 = vtos %v893
        %v895 = vstv %s894
        %v896 = vmul.f32 %v895, %v590
        %v897 = vsub.f32 %v877, %v896
        %v898 = vsub.f32 %v879, %v896
        %v899 = vmul.f32 %v897, %v897
        %v900 = vmul.f32 %v898, %v898
        %v901 = vadd.f32 %v899, %v900
        %902 = vadd.xlane.f32.xlu0 %v901
        %v903 = vpop.xlane.xlu0 %902
        %v904 = vrot.slane %v903, 4
        %v905 = vadd.f32 %v903, %v904
        %v906 = vrot.slane %v905, 2
        %v907 = vadd.f32 %v905, %v906
        %v908 = vrot.slane %v907, 1
        %v909 = vadd.f32 %v907, %v908
        %s910 = vtos %v909
        %v911 = vstv %s910
        %v912 = vmul.f32 %v911, %v590
        %v913 = vadd.f32 %v912, 1e-05
        %v914 = vrsqrt.pop %v913
        %v915 = vmul.f32 %v897, %v914
        %v916 = vmul.f32 %v898, %v914
        %918 = vset.pattern.permute.xlu0 0
        %919 = vperm.xlu0 %918, %v883
        %v920 = vpop.permute.xlu0 %919
        %v922 = vmul.f32 %v915, %v920
        %v923 = vmul.f32 %v916, %v920
        %925 = vset.pattern.permute.xlu0 0
        %926 = vperm.xlu0 %925, %v884
        %v927 = vpop.permute.xlu0 %926
        %v929 = vadd.f32 %v922, %v927
        %v930 = vadd.f32 %v923, %v927
        %931 = vst [vmem:[%s271] sm:$0xff] %v929
        %932 = vst [vmem:[%s271 + $0x8] sm:$0xff] %v930
        %s933 = sand.u32 %s181, 1
        %s934 = scalar_lea.sflag [#allocation5], %s933
        %s935 = sand.u32 %s181, 1
        %s936 = smul.addr %s935, 16
        %s937 = scalar_lea.vmem [#allocation4], %s936
        // Predicated region
        $region49: #{tpu_custom_call.1} parent=47 // pred_check
          %p938 = pneg %p191
        $region50: #{tpu_custom_call.1} parent=47 // pred_check_branch
          %940 = sbr.rel (%p938) target = $region52
        $region51: #{tpu_custom_call.1} parent=47 // pred_region
          %s942 = ssub.s32 256, 256
          %943 = vsyncadd %s934, %s942
          %s944 = smul.addr %s21, 2
          %s945 = smul.addr %s944, 128
          %s946 = scalar_lea.hbm %s7, %s945
          %s948 = sshll.u32 %s937, 4
          %s949 = int_to_ptr.vmem [resolvable:$true] %s948
          %951 = dma.vmem_to_hbm [thread:$0]  %s949, 256, %s946, %s934
        $region52: #{tpu_custom_call.1} parent=47 // pred_fallthru
          _
      $region48: #{tpu_custom_call.1} parent=5 // pred_fallthru
        _
      %p952 = scmp.le.s32.totalorder 2, %s16
      // Predicated region
      $region53: #{tpu_custom_call.1} parent=5 // pred_check
        %p953 = pneg %p952
      $region54: #{tpu_custom_call.1} parent=5 // pred_check_branch
        %955 = sbr.rel (%p953) target = $region56
      $region55: #{tpu_custom_call.1} parent=5 // pred_region
        %s956 = ssub.s32 %s16, 2
        // Predicated region
        $region57: #{tpu_custom_call.1} parent=55 // pred_check
          %p957 = pneg %p197
        $region58: #{tpu_custom_call.1} parent=55 // pred_check_branch
          %959 = sbr.rel (%p957) target = $region60
        $region59: #{tpu_custom_call.1} parent=55 // pred_region
          %s960 = sand.u32 %s182, 1
          %s961 = scalar_lea.sflag [#allocation5], %s960
          %s962 = sand.u32 %s182, 1
          %s963 = smul.addr %s962, 16
          %s964 = scalar_lea.vmem [#allocation4], %s963
          %965 = dma.done %s961, 256
        $region60: #{tpu_custom_call.1} parent=55 // pred_fallthru
          _
      $region56: #{tpu_custom_call.1} parent=5 // pred_fallthru
        _
    $region6: #{tpu_custom_call.1} parent=1 // loop_footer
      %s20 = sadd.s32 1, %s16
    $region7: #{tpu_custom_call.1} parent=1 // loop_footer_branch
      %15 = sbr.rel target = $region3
    $region8: #{tpu_custom_call.1} parent=1 // loop_exit
      _
    %966 = vsyncpa [#allocation5], 1
    %s967 = scalar_lea.sflag [#allocation5], 1
    %968 = vsyncpa %s967, 1

</llo_original>
